<compile_context>
chip_gen: v5e
topology: v5e:2x2
jax: 0.10.0
libtpu: 0.0.40
codegen_flags: <defaults>
</compile_context>

<pallas_src>
import functools
import math

import jax
import jax.numpy as jnp
import numpy as np
from jax.experimental import pallas as pl
from jax.experimental.pallas import tpu as pltpu

LN_EPS = 1e-5  # PyTorch LayerNorm default


def _layernorm(x, gamma, beta):
    mu = jnp.mean(x, axis=-1, keepdims=True)
    var = jnp.mean((x - mu) ** 2, axis=-1, keepdims=True)
    return (x - mu) * jax.lax.rsqrt(var + LN_EPS) * gamma + beta


# --------------------- Kernel A: pair bias, head-major output ---------------------
def pair_bias_kernel(z_ref, gz_ref, bz_ref, wb_ref, b_ref):
    _, tr, r, d_pair = z_ref.shape
    n_head = wb_ref.shape[0]
    # LN math in f32 (works for f32 or bf16 Z inputs).
    zn = _layernorm(z_ref[0].astype(jnp.float32), gz_ref[0], bz_ref[0])
    zb = zn.reshape(tr * r, d_pair).astype(jnp.bfloat16)
    # (n_head, d_pair) x (tr*r, d_pair)^T -> (n_head, tr*r) on MXU, f32 accumulate.
    bh = jax.lax.dot_general(
        wb_ref[...].astype(jnp.bfloat16), zb,
        dimension_numbers=(((1,), (1,)), ((), ())),
        preferred_element_type=jnp.float32)
    # Head-major, lane-dense (last dim = R) store, bf16.
    b_ref[0] = bh.reshape(n_head, tr, r).astype(b_ref.dtype)


# --------------------- Kernel B: row attention with pair bias ---------------------
def row_attn_kernel(m_ref, bias_ref, gm_ref, bm_ref, wf_ref, gb_ref, wo_ref,
                    ob_ref, out_ref, *, tq):
    _, ts, r, d_node = m_ref.shape
    n_head = bias_ref.shape[1]
    hc = wo_ref.shape[0]
    c = hc // n_head
    nq = r // tq

    gamma, beta = gm_ref[0], bm_ref[0]
    gbias, obias = gb_ref[0], ob_ref[0]
    wf = wf_ref[...]          # (d_node, 4*hc) bf16, [q|k|v|gate] fused
    wo = wo_ref[...]          # (hc, d_node)   bf16

    for t in range(ts):                                   # static, small ts
        x_raw = m_ref[0, t]                               # (r, d_node) pre-LN, f32
        xb = _layernorm(x_raw, gamma, beta).astype(jnp.bfloat16)
        # Single fused wide-N projection on the MXU, f32 accumulate.
        proj = jnp.dot(xb, wf, preferred_element_type=jnp.float32)   # (r, 4*hc)

        def to_heads(p2d):                                # (r, hc) -> (n_head, r, c) bf16
            return p2d.astype(jnp.bfloat16).reshape(r, n_head, c).transpose(1, 0, 2)

        q = to_heads(proj[:, :hc])                        # c^-0.5 pre-folded in wrapper
        k = to_heads(proj[:, hc:2 * hc])
        v = to_heads(proj[:, 2 * hc:3 * hc])
        gate = jax.nn.sigmoid(proj[:, 3 * hc:] + gbias)   # (r, hc) f32

        # Q-tiled attention: live logits/probs are only (n_head, tq, r).
        for qi in range(nq):                              # static unroll
            sl = slice(qi * tq, (qi + 1) * tq)
            logits = jnp.einsum('hqc,hkc->hqk', q[:, sl], k,
                                preferred_element_type=jnp.float32)
            # Upcast only the bf16 bias slice needed for this tile.
            logits = logits + bias_ref[0, :, sl, :]
            mx = jnp.max(logits, axis=-1, keepdims=True)
            p = jnp.exp(logits - mx)                      # f32 softmax math
            inv = pl.reciprocal(jnp.sum(p, axis=-1, keepdims=True), approx=True)
            wa = jnp.einsum('hqk,hkc->hqc', p.astype(jnp.bfloat16), v,
                            preferred_element_type=jnp.float32) * inv
            wa = wa.transpose(1, 0, 2).reshape(tq, hc) * gate[sl]    # (tq, hc) f32
            o = jnp.dot(wa.astype(jnp.bfloat16), wo,
                        preferred_element_type=jnp.float32)          # (tq, d_node)
            # bias_dropout_add with all-ones dropout mask, written per q-tile.
            out_ref[0, t, sl, :] = x_raw[sl] + o + obias


# ------------------------------------ wrapper ------------------------------------
def _largest_divisor(total, target):
    t = max(1, min(total, target))
    while total % t:
        t -= 1
    return t


def _choose_aligned_tile(total, target_rows, align=8, prefer=16):
    """Largest divisor of `total` that is a multiple of `align`, <= target; else total."""
    limit = max(align, min(total, target_rows))
    cands = [t for t in range(align, limit + 1, align) if total % t == 0]
    if not cands:
        return total                                    # full extent is always legal
    pref = [t for t in cands if t % prefer == 0]
    return max(pref) if pref else max(cands)


def _vmem_limit_bytes():
    kind = ""
    try:
        kind = jax.devices()[0].device_kind.lower()
    except Exception:
        pass
    if "v7" in kind:                       # 64 MiB VMEM / TC: leave headroom
        return 48 * 1024 * 1024
    if ("v5 lite" in kind) or ("v5e" in kind) or ("v6" in kind):
        return 100 * 1024 * 1024           # 128 MiB physical: let tiles grow
    return 64 * 1024 * 1024                # conservative default


def msa_row_attention_with_pair_bias(M_raw, Z, params, *, n_head, c,
                                     msa_rows_per_step=4, pair_row_tile=None,
                                     q_tile=256):
    B, S, R, d_node = M_raw.shape
    d_pair = Z.shape[-1]
    hc = n_head * c
    f32, bf16 = jnp.float32, jnp.bfloat16
    vmem_limit = _vmem_limit_bytes()

    # ---- Kernel A: pair bias, tiled over residue-i, head-major bf16 output ----
    if pair_row_tile is None:
        tile_bytes = (8 << 20) if vmem_limit <= 48 * 1024 * 1024 else (16 << 20)
        pair_row_tile = tile_bytes // max(1, R * d_pair * Z.dtype.itemsize)
    tr = _choose_aligned_tile(R, pair_row_tile)          # multiple of 8/16 or == R

    bias = pl.pallas_call(
        pair_bias_kernel,
        out_shape=jax.ShapeDtypeStruct((B, n_head, R, R), bf16),
        grid=(B, R // tr),
        in_specs=[
            pl.BlockSpec((1, tr, R, d_pair), lambda b, i: (b, i, 0, 0)),
            pl.BlockSpec((1, d_pair), lambda b, i: (0, 0)),
            pl.BlockSpec((1, d_pair), lambda b, i: (0, 0)),
            pl.BlockSpec((n_head, d_pair), lambda b, i: (0, 0)),
        ],
        out_specs=pl.BlockSpec((1, n_head, tr, R), lambda b, i: (b, 0, i, 0)),
        compiler_params=pltpu.CompilerParams(
            dimension_semantics=("parallel", "parallel"),
            vmem_limit_bytes=vmem_limit),
    )(Z, params["ln_z_g"][None], params["ln_z_b"][None], params["w_b"])

    # ---- Kernel B: row attention over blocks of TS MSA rows ----
    ts = _largest_divisor(S, msa_rows_per_step)
    tq = _choose_aligned_tile(R, q_tile, align=8, prefer=8)   # q-tile (mult of 8 or R)

    scale = c ** (-0.5)
    w_qkv = params["w_qkv"]                              # (3*hc, d_node)
    # Fused [q (scaled) | k | v | gate] projection weight: (d_node, 4*hc) bf16.
    w_fused = jnp.concatenate(
        [w_qkv[:hc] * scale, w_qkv[hc:2 * hc], w_qkv[2 * hc:], params["w_gate"]],
        axis=0).T.astype(bf16)
    wo = params["w_o"].T.astype(bf16)                    # (hc, d_node)

    kernel = functools.partial(row_attn_kernel, tq=tq)
    bias_index_map = lambda b, s: (b, 0, 0, 0)           # constant along s: reused

    def run(bias_spec):
        return pl.pallas_call(
            kernel,
            out_shape=jax.ShapeDtypeStruct((B, S, R, d_node), f32),
            grid=(B, S // ts),
            in_specs=[
                pl.BlockSpec((1, ts, R, d_node), lambda b, s: (b, s, 0, 0)),
                bias_spec,
                pl.BlockSpec((1, d_node), lambda b, s: (0, 0)),
                pl.BlockSpec((1, d_node), lambda b, s: (0, 0)),
                pl.BlockSpec((d_node, 4 * hc), lambda b, s: (0, 0)),
                pl.BlockSpec((1, hc), lambda b, s: (0, 0)),
                pl.BlockSpec((hc, d_node), lambda b, s: (0, 0)),
                pl.BlockSpec((1, d_node), lambda b, s: (0, 0)),
            ],
            out_specs=pl.BlockSpec((1, ts, R, d_node), lambda b, s: (b, s, 0, 0)),
            compiler_params=pltpu.CompilerParams(
                dimension_semantics=("parallel", "parallel"),
                vmem_limit_bytes=vmem_limit),
        )(M_raw, bias,
          params["ln_m_g"][None], params["ln_m_b"][None],
          w_fused, params["gating_bias"][None], wo, params["out_bias"][None])

    try:
        # Single-buffer the bias (block index constant in s): one resident copy.
        out = run(pl.BlockSpec((1, n_head, R, R), bias_index_map,
                               pipeline_mode=pl.Buffered(1)))
    except Exception:
        # Fall back to default pipelining if Buffered(1) is not supported.
        out = run(pl.BlockSpec((1, n_head, R, R), bias_index_map))
    return out


# ------------------------------ pure-JAX reference --------------------------------
def reference(M_raw, Z, params, *, n_head, c):
    hp = jax.lax.Precision.HIGHEST
    M = _layernorm(M_raw, params["ln_m_g"], params["ln_m_b"])
    Zn = _layernorm(Z, params["ln_z_g"], params["ln_z_b"])
    b = jnp.einsum("bijd,hd->bhij", Zn, params["w_b"], precision=hp)
    hc = n_head * c
    qkv = jnp.einsum("bsrd,ed->bsre", M, params["w_qkv"], precision=hp)
    q, k, v = qkv[..., :hc], qkv[..., hc:2 * hc], qkv[..., 2 * hc:]

    def split(t):  # 'b s r (h c) -> b s h r c'
        return t.reshape(*t.shape[:-1], n_head, c).transpose(0, 1, 3, 2, 4)

    q, k, v = split(q) * c ** (-0.5), split(k), split(v)
    logits = jnp.einsum("bshqc,bshkc->bshqk", q, k, precision=hp) + b[:, None]
    w = jax.nn.softmax(logits, axis=-1)
    wa = jnp.einsum("bshqk,bshkc->bshqc", w, v, precision=hp)
    wa = wa.transpose(0, 1, 3, 2, 4).reshape(*M.shape[:-1], hc)
    gate = jax.nn.sigmoid(
        jnp.einsum("bsrd,ed->bsre", M, params["w_gate"], precision=hp)
        + params["gating_bias"])
    wa = wa * gate
    out = jnp.einsum("bsre,de->bsrd", wa, params["w_o"], precision=hp)
    return M_raw + out + params["out_bias"]


if __name__ == "__main__":
    B, S, R = 2, 8, 16
    d_node, d_pair, c, n_head = 32, 16, 8, 4
    hc = n_head * c

    key = jax.random.PRNGKey(0)
    ks = jax.random.split(key, 12)
    f32 = jnp.float32

    params = {
        "ln_m_g": 1.0 + 0.05 * jax.random.normal(ks[0], (d_node,), f32),
        "ln_m_b": 0.05 * jax.random.normal(ks[1], (d_node,), f32),
        "ln_z_g": 1.0 + 0.05 * jax.random.normal(ks[2], (d_pair,), f32),
        "ln_z_b": 0.05 * jax.random.normal(ks[3], (d_pair,), f32),
        # linear_b_weights: (n_head, d_pair), std = 1/sqrt(d_pair)
        "w_b": jax.random.normal(ks[4], (n_head, d_pair), f32) / math.sqrt(d_pair),
        # to_qkv: (3*h*c, d_node), no bias
        "w_qkv": jax.random.normal(ks[5], (3 * hc, d_node), f32) / math.sqrt(d_node),
        # gating_linear: (h*c, d_node), no bias; gating_bias init ones
        "w_gate": 0.1 * jax.random.normal(ks[6], (hc, d_node), f32),
        "gating_bias": jnp.ones((hc,), f32),
        # o_linear: (d_node, h*c), bias fused out
        "w_o": jax.random.normal(ks[7], (d_node, hc), f32) / math.sqrt(hc),
        "out_bias": 0.1 * jax.random.normal(ks[8], (d_node,), f32),
    }

    M_raw = jax.random.normal(ks[9], (B, S, R, d_node), f32)
    Z = jax.random.normal(ks[10], (B, R, R, d_pair), f32)

    out = msa_row_attention_with_pair_bias(M_raw, Z, params, n_head=n_head, c=c)
    out = jax.block_until_ready(out)

    ref = jax.block_until_ready(reference(M_raw, Z, params, n_head=n_head, c=c))
    # Kernel uses bf16 MXU operands / bf16 bias with f32 accumulation; the reference
    # is full f32 HIGHEST, so allow bf16-level tolerance.
    np.testing.assert_allclose(np.asarray(out), np.asarray(ref), atol=5e-2, rtol=5e-2)

    print("KERNEL_OK")
</pallas_src>

<mosaic_0001>
module attributes {stable_mosaic.version = 11 : i64} {
  func.func @pair_bias_kernel(%arg0: i32, %arg1: i32, %arg2: memref<1x16x16x16xf32, #tpu.memory_space<vmem>>, %arg3: memref<1x16xf32, #tpu.memory_space<vmem>>, %arg4: memref<1x16xf32, #tpu.memory_space<vmem>>, %arg5: memref<4x16xf32, #tpu.memory_space<vmem>>, %arg6: memref<1x4x16x16xbf16, #tpu.memory_space<vmem>>) attributes {dimension_semantics = [#tpu.dimension_semantics<parallel>, #tpu.dimension_semantics<parallel>], iteration_bounds = array<i64: 2, 1>, scalar_prefetch = 0 : i64, scratch_operands = 0 : i64, tpu.core_type = #tpu.core_type<tc>, window_params = [{transform_indices = @transform_0, window_bounds = array<i64: 1, 16, 16, 16>}, {pipeline_mode = #tpu.pipeline_mode<synchronous>, transform_indices = @transform_1, window_bounds = array<i64: 1, 16>}, {pipeline_mode = #tpu.pipeline_mode<synchronous>, transform_indices = @transform_2, window_bounds = array<i64: 1, 16>}, {pipeline_mode = #tpu.pipeline_mode<synchronous>, transform_indices = @transform_3, window_bounds = array<i64: 4, 16>}, {transform_indices = @transform_4, window_bounds = array<i64: 1, 4, 16, 16>}]} {
    %c0 = arith.constant 0 : index
    %c0_0 = arith.constant 0 : index
    %c0_1 = arith.constant 0 : index
    %c0_2 = arith.constant 0 : index
    %0 = vector.load %arg2[%c0, %c0_0, %c0_1, %c0_2] : memref<1x16x16x16xf32, #tpu.memory_space<vmem>>, vector<1x16x16x16xf32>
    %1 = vector.shape_cast %0 : vector<1x16x16x16xf32> to vector<16x16x16xf32>
    %c0_3 = arith.constant 0 : index
    %c0_4 = arith.constant 0 : index
    %2 = vector.load %arg3[%c0_3, %c0_4] : memref<1x16xf32, #tpu.memory_space<vmem>>, vector<1x16xf32>
    %3 = vector.shape_cast %2 : vector<1x16xf32> to vector<16xf32>
    %c0_5 = arith.constant 0 : index
    %c0_6 = arith.constant 0 : index
    %4 = vector.load %arg4[%c0_5, %c0_6] : memref<1x16xf32, #tpu.memory_space<vmem>>, vector<1x16xf32>
    %5 = vector.shape_cast %4 : vector<1x16xf32> to vector<16xf32>
    %cst = arith.constant dense<0.000000e+00> : vector<16x16xf32>
    %6 = vector.multi_reduction <add>, %1, %cst [2] : vector<16x16x16xf32> to vector<16x16xf32>
    %7 = vector.shape_cast %6 : vector<16x16xf32> to vector<16x16x1xf32>
    %cst_7 = arith.constant 1.600000e+01 : f32
    %8 = vector.broadcast %cst_7 : f32 to vector<16x16x1xf32>
    %9 = arith.divf %7, %8 : vector<16x16x1xf32>
    %10 = vector.broadcast %9 : vector<16x16x1xf32> to vector<16x16x16xf32>
    %11 = arith.subf %1, %10 : vector<16x16x16xf32>
    %12 = arith.mulf %11, %11 : vector<16x16x16xf32>
    %cst_8 = arith.constant dense<0.000000e+00> : vector<16x16xf32>
    %13 = vector.multi_reduction <add>, %12, %cst_8 [2] : vector<16x16x16xf32> to vector<16x16xf32>
    %14 = vector.shape_cast %13 : vector<16x16xf32> to vector<16x16x1xf32>
    %cst_9 = arith.constant 1.600000e+01 : f32
    %15 = vector.broadcast %cst_9 : f32 to vector<16x16x1xf32>
    %16 = arith.divf %14, %15 : vector<16x16x1xf32>
    %17 = vector.broadcast %9 : vector<16x16x1xf32> to vector<16x16x16xf32>
    %18 = arith.subf %1, %17 : vector<16x16x16xf32>
    %cst_10 = arith.constant 9.99999974E-6 : f32
    %19 = vector.broadcast %cst_10 : f32 to vector<16x16x1xf32>
    %20 = arith.addf %16, %19 : vector<16x16x1xf32>
    %21 = math.rsqrt %20 : vector<16x16x1xf32>
    %22 = vector.broadcast %21 : vector<16x16x1xf32> to vector<16x16x16xf32>
    %23 = arith.mulf %18, %22 : vector<16x16x16xf32>
    %24 = vector.shape_cast %3 : vector<16xf32> to vector<1x1x16xf32>
    %25 = vector.broadcast %24 : vector<1x1x16xf32> to vector<16x16x16xf32>
    %26 = arith.mulf %23, %25 : vector<16x16x16xf32>
    %27 = vector.shape_cast %5 : vector<16xf32> to vector<1x1x16xf32>
    %28 = vector.broadcast %27 : vector<1x1x16xf32> to vector<16x16x16xf32>
    %29 = arith.addf %26, %28 : vector<16x16x16xf32>
    %30 = vector.shape_cast %29 : vector<16x16x16xf32> to vector<256x16xf32>
    %31 = arith.truncf %30 : vector<256x16xf32> to vector<256x16xbf16>
    %c0_11 = arith.constant 0 : index
    %c0_12 = arith.constant 0 : index
    %32 = vector.load %arg5[%c0_11, %c0_12] : memref<4x16xf32, #tpu.memory_space<vmem>>, vector<4x16xf32>
    %33 = arith.truncf %32 : vector<4x16xf32> to vector<4x16xbf16>
    %cst_13 = arith.constant dense<0.000000e+00> : vector<4x256xf32>
    %34 = tpu.matmul %33, %31, %cst_13 {dimension_numbers = #tpu.dot_dimension_numbers<[1], [1], [0], [0], [0, 0, 1, 0], [], []>} : vector<4x16xbf16>, vector<256x16xbf16>, vector<4x256xf32> -> vector<4x256xf32>
    %35 = vector.shape_cast %34 : vector<4x256xf32> to vector<4x16x16xf32>
    %36 = arith.truncf %35 : vector<4x16x16xf32> to vector<4x16x16xbf16>
    %c0_14 = arith.constant 0 : index
    %c0_15 = arith.constant 0 : index
    %c0_16 = arith.constant 0 : index
    %c0_17 = arith.constant 0 : index
    %37 = vector.load %arg6[%c0_14, %c0_15, %c0_16, %c0_17] : memref<1x4x16x16xbf16, #tpu.memory_space<vmem>>, vector<1x4x16x16xbf16>
    %38 = vector.shape_cast %37 : vector<1x4x16x16xbf16> to vector<4x16x16xbf16>
    %39 = vector.shape_cast %36 : vector<4x16x16xbf16> to vector<1x4x16x16xbf16>
    tpu.vector_store %arg6[%c0_14, %c0_15, %c0_16, %c0_17], %39 {strides = array<i32>} : memref<1x4x16x16xbf16, #tpu.memory_space<vmem>>, vector<1x4x16x16xbf16>,
    return
  }
  func.func @transform_0(%arg0: i32, %arg1: i32) -> (i32, i32, i32, i32) {
    %c0_i32 = arith.constant 0 : i32
    %c0_i32_0 = arith.constant 0 : i32
    %c0_i32_1 = arith.constant 0 : i32
    return %arg0, %arg1, %c0_i32, %c0_i32_0 : i32, i32, i32, i32
  }
  func.func @transform_1(%arg0: i32, %arg1: i32) -> (i32, i32) {
    %c0_i32 = arith.constant 0 : i32
    %c0_i32_0 = arith.constant 0 : i32
    %c0_i32_1 = arith.constant 0 : i32
    return %c0_i32, %c0_i32_0 : i32, i32
  }
  func.func @transform_2(%arg0: i32, %arg1: i32) -> (i32, i32) {
    %c0_i32 = arith.constant 0 : i32
    %c0_i32_0 = arith.constant 0 : i32
    %c0_i32_1 = arith.constant 0 : i32
    return %c0_i32, %c0_i32_0 : i32, i32
  }
  func.func @transform_3(%arg0: i32, %arg1: i32) -> (i32, i32) {
    %c0_i32 = arith.constant 0 : i32
    %c0_i32_0 = arith.constant 0 : i32
    %c0_i32_1 = arith.constant 0 : i32
    return %c0_i32, %c0_i32_0 : i32, i32
  }
  func.func @transform_4(%arg0: i32, %arg1: i32) -> (i32, i32, i32, i32) {
    %c0_i32 = arith.constant 0 : i32
    %c0_i32_0 = arith.constant 0 : i32
    %c0_i32_1 = arith.constant 0 : i32
    return %arg0, %c0_i32, %arg1, %c0_i32_0 : i32, i32, i32, i32
  }
}

</mosaic_0001>

<llo_original>
// kernel: tpu_custom_call.1
$region0: #{tpu_custom_call.1}
  #allocation0 [shape = 'u32[]', space=smem, size = 0x4, offset = 0x4, fixed_abs, tag = 'smem constant byte address 0x4 - core index']
  #allocation1 [shape = 'u32[72,128]{1,0:T(1,128)}', space=vmem, size = 0x9000, scoped, tag = 'internal scratch']
  %s0 = inlined_call_operand.hbm [shape: f32[2,16,16,16], index: 0, kind: input, shape index: {}]
  %s1 = inlined_call_operand.hbm [shape: f32[1,16], index: 1, kind: input, shape index: {}]
  %s2 = inlined_call_operand.vmem [shape: f32[1,16], index: 2, kind: input, shape index: {}]
  %s3 = inlined_call_operand.hbm [shape: f32[4,16], index: 3, kind: input, shape index: {}]
  %s4 = inlined_call_operand.hbm [shape: bf16[2,4,16,16], index: 4, kind: output, shape index: {}]
  %s5 = sld [smem:[#allocation0]]
  $region61: #{tpu_custom_call.1} parent=0
    _
  %s7 = ssub.s32 1, %s5
  %s8 = scalar_select 0, %s7, %s5
  $region1: #{tpu_custom_call.1} parent=0
    #allocation2 [shape = 'u8[262144]{0}', space=vmem, size = 0x40000, scoped, tag = 'input window, operand 0']
    #allocation3 [shape = 's32[2]{0}', space=sflag, size = 0x8, scoped, tag = 'scoped memory for tpu_custom_call.1']
    #allocation4 [shape = 's32[2]{0}', space=sflag, size = 0x8, scoped, tag = 'scoped memory for tpu_custom_call.1']
    #allocation5 [shape = 'u8[512]{0}', space=vmem, size = 0x400, scoped, tag = 'input window, operand 1, single buffered']
    #allocation6 [shape = 's32[1]{0}', space=sflag, size = 0x4, scoped, tag = 'scoped memory for tpu_custom_call.1']
    #allocation7 [shape = 'u8[2048]{0}', space=vmem, size = 0x800, scoped, tag = 'input window, operand 3, single buffered']
    #allocation8 [shape = 'u8[32768]{0}', space=vmem, size = 0x8000, scoped, tag = 'output window, operand 0']
    %9 = vsyncpa [#allocation3], 0
    %s10 = scalar_lea.sflag [#allocation3], 1
    %11 = vsyncpa %s10, 0
    %12 = vsyncpa [#allocation6], 0
    %13 = vsyncpa [#allocation4], 0
    %s14 = scalar_lea.sflag [#allocation4], 1
    %15 = vsyncpa %s14, 0
    loop: start=0, step=1, limit=4
    $region2: #{tpu_custom_call.1} parent=1 // loop_pre_header
      _
    $region3: #{tpu_custom_call.1} parent=1 // loop_header
      %s17 = sphi 0, %s21
      %p18 = scmp.ge.s32.totalorder %s17, 4
      %s24 = sphi 0, %s36
      %s25 = sphi 0, %s32
      %s26 = sphi 0, %s24
      %s27 = sphi 0, %s25
      %s28 = sphi 0, %s26
      %s29 = sphi 0, %s27
      %s41 = sphi 0, %s43
      %s44 = sphi 0, %s41
      %s45 = sphi 0, %s44
      %s61 = sphi 0, %s45
      %s65 = sphi 0, %s65
      %s67 = sphi 0, %s65
      %s68 = sphi 0, %s67
      %s82 = sphi 0, %s68
      %s86 = sphi 0, %s86
      %s88 = sphi 0, %s86
      %s89 = sphi 0, %s88
      %s103 = sphi 0, %s89
      %s107 = sphi 0, %s107
      %s109 = sphi 0, %s107
      %s110 = sphi 0, %s109
      %s124 = sphi 0, %s110
      %s132 = sphi 0, %s134
      %s135 = sphi 0, %s132
      %s136 = sphi 0, %s135
      %s152 = sphi 0, %s136
    $region4: #{tpu_custom_call.1} parent=1 // loop_header_branch
      %20 = sbr.rel (%p18) target = $region8
    $region5: #{tpu_custom_call.1} parent=1 // loop_body
      %s22 = ssub.s32 %s17, 1
      %s23 = ssub.s32 %s17, 2
      %s30 = sadd.s32 1, %s25
      %p31 = scmp.ge.s32.totalorder %s30, 1
      %s32 = scalar_select %p31, 0, %s30
      %s33 = sadd.s32 1, %s24
      %s34 = scalar_select %p31, %s33, %s24
      %p35 = scmp.ge.s32.totalorder %s34, 2
      %s36 = scalar_select %p35, 0, %s34
      %s37 = ssub.s32 %s24, %s36
      %s38 = ssub.s32 %s25, %s32
      %s39 = sor.u32 %s37, %s38
      %p40 = scmp.eq.s32.totalorder %s39, 0
      %s42 = sadd.s32 %s41, 1
      %s43 = scalar_select %p40, %s41, %s42
      %p46 = pneg %p40
      %p47 = scmp.eq.s32.totalorder %s17, 1
      %p48 = por %p46, %p47
      %p49 = scmp.ne.s32.totalorder %s41, %s44
      %p50 = scmp.eq.s32.totalorder %s17, 0
      %p51 = por %p49, %p50
      %p52 = scmp.ne.s32.totalorder %s41, %s44
      %p53 = scmp.eq.s32.totalorder %s22, 1
      %p54 = por %p52, %p53
      %p55 = scmp.ne.s32.totalorder %s44, %s45
      %p56 = scmp.eq.s32.totalorder %s22, 0
      %p57 = por %p55, %p56
      %p58 = scmp.ne.s32.totalorder %s44, %s45
      %p59 = scmp.eq.s32.totalorder %s23, 1
      %p60 = por %p58, %p59
      %p62 = scmp.ne.s32.totalorder %s45, %s61
      %p63 = scmp.eq.s32.totalorder %s23, 0
      %p64 = por %p62, %p63
      %s66 = sadd.s32 %s65, 1
      %p69 = scmp.eq.s32.totalorder %s17, 1
      %p70 = scmp.ne.s32.totalorder %s65, %s67
      %p71 = scmp.eq.s32.totalorder %s17, 0
      %p72 = por %p70, %p71
      %p73 = scmp.ne.s32.totalorder %s65, %s67
      %p74 = scmp.eq.s32.totalorder %s22, 1
      %p75 = por %p73, %p74
      %p76 = scmp.ne.s32.totalorder %s67, %s68
      %p77 = scmp.eq.s32.totalorder %s22, 0
      %p78 = por %p76, %p77
      %p79 = scmp.ne.s32.totalorder %s67, %s68
      %p80 = scmp.eq.s32.totalorder %s23, 1
      %p81 = por %p79, %p80
      %p83 = scmp.ne.s32.totalorder %s68, %s82
      %p84 = scmp.eq.s32.totalorder %s23, 0
      %p85 = por %p83, %p84
      %s87 = sadd.s32 %s86, 1
      %p90 = scmp.eq.s32.totalorder %s17, 1
      %p91 = scmp.ne.s32.totalorder %s86, %s88
      %p92 = scmp.eq.s32.totalorder %s17, 0
      %p93 = por %p91, %p92
      %p94 = scmp.ne.s32.totalorder %s86, %s88
      %p95 = scmp.eq.s32.totalorder %s22, 1
      %p96 = por %p94, %p95
      %p97 = scmp.ne.s32.totalorder %s88, %s89
      %p98 = scmp.eq.s32.totalorder %s22, 0
      %p99 = por %p97, %p98
      %p100 = scmp.ne.s32.totalorder %s88, %s89
      %p101 = scmp.eq.s32.totalorder %s23, 1
      %p102 = por %p100, %p101
      %p104 = scmp.ne.s32.totalorder %s89, %s103
      %p105 = scmp.eq.s32.totalorder %s23, 0
      %p106 = por %p104, %p105
      %s108 = sadd.s32 %s107, 1
      %p111 = scmp.eq.s32.totalorder %s17, 1
      %p112 = scmp.ne.s32.totalorder %s107, %s109
      %p113 = scmp.eq.s32.totalorder %s17, 0
      %p114 = por %p112, %p113
      %p115 = scmp.ne.s32.totalorder %s107, %s109
      %p116 = scmp.eq.s32.totalorder %s22, 1
      %p117 = por %p115, %p116
      %p118 = scmp.ne.s32.totalorder %s109, %s110
      %p119 = scmp.eq.s32.totalorder %s22, 0
      %p120 = por %p118, %p119
      %p121 = scmp.ne.s32.totalorder %s109, %s110
      %p122 = scmp.eq.s32.totalorder %s23, 1
      %p123 = por %p121, %p122
      %p125 = scmp.ne.s32.totalorder %s110, %s124
      %p126 = scmp.eq.s32.totalorder %s23, 0
      %p127 = por %p125, %p126
      %s128 = ssub.s32 %s24, %s36
      %s129 = ssub.s32 %s25, %s32
      %s130 = sor.u32 %s128, %s129
      %p131 = scmp.eq.s32.totalorder %s130, 0
      %s133 = sadd.s32 %s132, 1
      %s134 = scalar_select %p131, %s132, %s133
      %p137 = pneg %p131
      %p138 = scmp.eq.s32.totalorder %s17, 1
      %p139 = por %p137, %p138
      %p140 = scmp.ne.s32.totalorder %s132, %s135
      %p141 = scmp.eq.s32.totalorder %s17, 0
      %p142 = por %p140, %p141
      %p143 = scmp.ne.s32.totalorder %s132, %s135
      %p144 = scmp.eq.s32.totalorder %s22, 1
      %p145 = por %p143, %p144
      %p146 = scmp.ne.s32.totalorder %s135, %s136
      %p147 = scmp.eq.s32.totalorder %s22, 0
      %p148 = por %p146, %p147
      %p149 = scmp.ne.s32.totalorder %s135, %s136
      %p150 = scmp.eq.s32.totalorder %s23, 1
      %p151 = por %p149, %p150
      %p153 = scmp.ne.s32.totalorder %s136, %s152
      %p154 = scmp.eq.s32.totalorder %s23, 0
      %p155 = por %p153, %p154
      %p156 = scmp.le.s32.totalorder 1, %s17
      %p157 = scmp.lt.s32.totalorder %s17, 3
      %p158 = pnand %p156, %p157
      %p159 = pneg %p158
      // Predicated region
      $region9: #{tpu_custom_call.1} parent=5 // pred_check
        _
      $region10: #{tpu_custom_call.1} parent=5 // pred_check_branch
        %161 = sbr.rel (%p158) target = $region12
      $region11: #{tpu_custom_call.1} parent=5 // pred_region
        %s162 = ssub.s32 %s17, 1
        // Predicated region
        $region13: #{tpu_custom_call.1} parent=11 // pred_check
          %p163 = pneg %p78
        $region14: #{tpu_custom_call.1} parent=11 // pred_check_branch
          %165 = sbr.rel (%p163) target = $region16
        $region15: #{tpu_custom_call.1} parent=11 // pred_region
          %167 = vsyncadd [#allocation6], 0
          %s169 = sshll.u32 %s1, 4
          %s170 = int_to_ptr.hbm [resolvable:$true] %s169
          %s171 = sshll.u32 [#allocation5], 4
          %s172 = int_to_ptr.vmem [resolvable:$true] %s171
          %174 = dma.hbm_to_vmem [thread:$0]  %s170, 16, %s172, [#allocation6]
        $region16: #{tpu_custom_call.1} parent=11 // pred_fallthru
          _
        // Predicated region
        $region17: #{tpu_custom_call.1} parent=11 // pred_check
          %p175 = pneg %p99
        $region18: #{tpu_custom_call.1} parent=11 // pred_check_branch
          %177 = sbr.rel (%p175) target = $region20
        $region19: #{tpu_custom_call.1} parent=11 // pred_region
          _
        $region20: #{tpu_custom_call.1} parent=11 // pred_fallthru
          _
        // Predicated region
        $region21: #{tpu_custom_call.1} parent=11 // pred_check
          %p178 = pneg %p120
        $region22: #{tpu_custom_call.1} parent=11 // pred_check_branch
          %180 = sbr.rel (%p178) target = $region24
        $region23: #{tpu_custom_call.1} parent=11 // pred_region
          %182 = vsyncadd [#allocation6], 0
          %s184 = sshll.u32 %s3, 4
          %s185 = int_to_ptr.hbm [resolvable:$true] %s184
          %s186 = sshll.u32 [#allocation7], 4
          %s187 = int_to_ptr.vmem [resolvable:$true] %s186
          %189 = dma.hbm_to_vmem [thread:$0]  %s185, 64, %s187, [#allocation6]
        $region24: #{tpu_custom_call.1} parent=11 // pred_fallthru
          _
      $region12: #{tpu_custom_call.1} parent=5 // pred_fallthru
        _
      %p190 = scmp.lt.s32.totalorder %s17, 2
      // Predicated region
      $region25: #{tpu_custom_call.1} parent=5 // pred_check
        %p191 = pneg %p190
      $region26: #{tpu_custom_call.1} parent=5 // pred_check_branch
        %193 = sbr.rel (%p191) target = $region28
      $region27: #{tpu_custom_call.1} parent=5 // pred_region
        // Predicated region
        $region29: #{tpu_custom_call.1} parent=27 // pred_check
          %p194 = pneg %p51
        $region30: #{tpu_custom_call.1} parent=27 // pred_check_branch
          %196 = sbr.rel (%p194) target = $region32
        $region31: #{tpu_custom_call.1} parent=27 // pred_region
          %s197 = sand.u32 %s41, 1
          %s198 = scalar_lea.sflag [#allocation3], %s197
          %s199 = sand.u32 %s41, 1
          %s200 = smul.addr %s199, 256
          %s201 = scalar_lea.vmem [#allocation2], %s200
          %s202 = smul.u32 16, %s25
          %204 = vsyncadd %s198, 0
          %s205 = smul.addr %s202, 2
          %s206 = smul.addr %s24, 32
          %s207 = sadd.s32 %s205, %s206
          %s208 = smul.addr %s207, 8
          %s209 = scalar_lea.hbm %s0, %s208
          %s210 = sshll.u32 %s209, 4
          %s211 = int_to_ptr.hbm [resolvable:$true] %s210
          %s212 = sshll.u32 %s201, 4
          %s213 = int_to_ptr.vmem [resolvable:$true] %s212
          %218 = dma.hbm_to_vmem [thread:$0]  %s211, 4096, %s213, %s198, 128, 128, 8
        $region32: #{tpu_custom_call.1} parent=27 // pred_fallthru
          _
      $region28: #{tpu_custom_call.1} parent=5 // pred_fallthru
        _
      %p219 = scmp.le.s32.totalorder 1, %s17
      %p220 = scmp.lt.s32.totalorder %s17, 3
      %p221 = pnand %p219, %p220
      %p222 = pneg %p221
      // Predicated region
      $region33: #{tpu_custom_call.1} parent=5 // pred_check
        _
      $region34: #{tpu_custom_call.1} parent=5 // pred_check_branch
        %224 = sbr.rel (%p221) target = $region36
      $region35: #{tpu_custom_call.1} parent=5 // pred_region
        %s225 = ssub.s32 %s17, 1
        %s226 = sand.u32 %s44, 1
        %s227 = scalar_lea.sflag [#allocation3], %s226
        %s228 = sand.u32 %s44, 1
        %s229 = smul.addr %s228, 256
        %s230 = scalar_lea.vmem [#allocation2], %s229
        // Predicated region
        $region37: #{tpu_custom_call.1} parent=35 // pred_check
          %p231 = pneg %p57
        $region38: #{tpu_custom_call.1} parent=35 // pred_check_branch
          %233 = sbr.rel (%p231) target = $region40
        $region39: #{tpu_custom_call.1} parent=35 // pred_region
          %235 = dma.done %s227, 4096
        $region40: #{tpu_custom_call.1} parent=35 // pred_fallthru
          _
        // Predicated region
        $region41: #{tpu_custom_call.1} parent=35 // pred_check
          %p236 = pneg %p78
        $region42: #{tpu_custom_call.1} parent=35 // pred_check_branch
          %238 = sbr.rel (%p236) target = $region44
        $region43: #{tpu_custom_call.1} parent=35 // pred_region
          %240 = dma.done [#allocation6], 16
        $region44: #{tpu_custom_call.1} parent=35 // pred_fallthru
          _
        // Predicated region
        $region45: #{tpu_custom_call.1} parent=35 // pred_check
          %p241 = pneg %p120
        $region46: #{tpu_custom_call.1} parent=35 // pred_check_branch
          %243 = sbr.rel (%p241) target = $region48
        $region47: #{tpu_custom_call.1} parent=35 // pred_region
          %245 = dma.done [#allocation6], 64
        $region48: #{tpu_custom_call.1} parent=35 // pred_fallthru
          _
        %s246 = sand.u32 %s44, 1
        %s247 = scalar_lea.sflag [#allocation3], %s246
        %s248 = sand.u32 %s44, 1
        %s249 = smul.addr %s248, 256
        %s250 = scalar_lea.vmem [#allocation2], %s249
        %p251 = pneg %p57
        %p252 = pneg %p54
        %p253 = pneg %p78
        %p254 = pneg %p75
        %p255 = pneg %p99
        %p256 = pneg %p96
        %p257 = pneg %p120
        %p258 = pneg %p117
        %p259 = pneg %p148
        %p260 = pneg %p145
        %s261 = sand.u32 %s135, 1
        %s262 = scalar_lea.sflag [#allocation4], %s261
        %s263 = sand.u32 %s135, 1
        %s264 = smul.addr %s263, 32
        %s265 = scalar_lea.vmem [#allocation8], %s264
        %s266 = smul.u32 16, %s27
        %s267 = smul.u32 2, %s27
        %v268 = vld [vmem:[%s230] sm:$0xff]
        %v269 = vld [vmem:[%s230 + $0x8] sm:$0xff]
        %v270 = vld [vmem:[%s230 + $0x10] sm:$0xff]
        %v271 = vld [vmem:[%s230 + $0x18] sm:$0xff]
        %v272 = vld [vmem:[%s230 + $0x20] sm:$0xff]
        %v273 = vld [vmem:[%s230 + $0x28] sm:$0xff]
        %v274 = vld [vmem:[%s230 + $0x30] sm:$0xff]
        %v275 = vld [vmem:[%s230 + $0x38] sm:$0xff]
        %v276 = vld [vmem:[%s230 + $0x40] sm:$0xff]
        %v277 = vld [vmem:[%s230 + $0x48] sm:$0xff]
        %v278 = vld [vmem:[%s230 + $0x50] sm:$0xff]
        %v279 = vld [vmem:[%s230 + $0x58] sm:$0xff]
        %v280 = vld [vmem:[%s230 + $0x60] sm:$0xff]
        %v281 = vld [vmem:[%s230 + $0x68] sm:$0xff]
        %v282 = vld [vmem:[%s230 + $0x70] sm:$0xff]
        %v283 = vld [vmem:[%s230 + $0x78] sm:$0xff]
        %v284 = vld [vmem:[%s230 + $0x80] sm:$0xff]
        %v285 = vld [vmem:[%s230 + $0x88] sm:$0xff]
        %v286 = vld [vmem:[%s230 + $0x90] sm:$0xff]
        %v287 = vld [vmem:[%s230 + $0x98] sm:$0xff]
        %v288 = vld [vmem:[%s230 + $0xa0] sm:$0xff]
        %v289 = vld [vmem:[%s230 + $0xa8] sm:$0xff]
        %v290 = vld [vmem:[%s230 + $0xb0] sm:$0xff]
        %v291 = vld [vmem:[%s230 + $0xb8] sm:$0xff]
        %v292 = vld [vmem:[%s230 + $0xc0] sm:$0xff]
        %v293 = vld [vmem:[%s230 + $0xc8] sm:$0xff]
        %v294 = vld [vmem:[%s230 + $0xd0] sm:$0xff]
        %v295 = vld [vmem:[%s230 + $0xd8] sm:$0xff]
        %v296 = vld [vmem:[%s230 + $0xe0] sm:$0xff]
        %v297 = vld [vmem:[%s230 + $0xe8] sm:$0xff]
        %v298 = vld [vmem:[%s230 + $0xf0] sm:$0xff]
        %v299 = vld [vmem:[%s230 + $0xf8] sm:$0xff]
        %v300 = vld [vmem:[#allocation5] sm:$0x1]
        %v301 = vld [vmem:[%s2] sm:$0x1]
        %vm302 = vcmask 130048
        %v303 = vsel %vm302, %v268, 0.0
        %304 = vadd.xlane.f32.xlu0 %v303
        %v305 = vpop.xlane.xlu0 %304
        %v306 = vsel %vm302, %v269, 0.0
        %307 = vadd.xlane.f32.xlu0 %v306
        %v308 = vpop.xlane.xlu0 %307
        %v309 = vsel %vm302, %v270, 0.0
        %310 = vadd.xlane.f32.xlu0 %v309
        %v311 = vpop.xlane.xlu0 %310
        %v312 = vsel %vm302, %v271, 0.0
        %313 = vadd.xlane.f32.xlu0 %v312
        %v314 = vpop.xlane.xlu0 %313
        %v315 = vsel %vm302, %v272, 0.0
        %316 = vadd.xlane.f32.xlu0 %v315
        %v317 = vpop.xlane.xlu0 %316
        %v318 = vsel %vm302, %v273, 0.0
        %319 = vadd.xlane.f32.xlu0 %v318
        %v320 = vpop.xlane.xlu0 %319
        %v321 = vsel %vm302, %v274, 0.0
        %322 = vadd.xlane.f32.xlu0 %v321
        %v323 = vpop.xlane.xlu0 %322
        %v324 = vsel %vm302, %v275, 0.0
        %325 = vadd.xlane.f32.xlu0 %v324
        %v326 = vpop.xlane.xlu0 %325
        %v327 = vsel %vm302, %v276, 0.0
        %328 = vadd.xlane.f32.xlu0 %v327
        %v329 = vpop.xlane.xlu0 %328
        %v330 = vsel %vm302, %v277, 0.0
        %331 = vadd.xlane.f32.xlu0 %v330
        %v332 = vpop.xlane.xlu0 %331
        %v333 = vsel %vm302, %v278, 0.0
        %334 = vadd.xlane.f32.xlu0 %v333
        %v335 = vpop.xlane.xlu0 %334
        %v336 = vsel %vm302, %v279, 0.0
        %337 = vadd.xlane.f32.xlu0 %v336
        %v338 = vpop.xlane.xlu0 %337
        %v339 = vsel %vm302, %v280, 0.0
        %340 = vadd.xlane.f32.xlu0 %v339
        %v341 = vpop.xlane.xlu0 %340
        %v342 = vsel %vm302, %v281, 0.0
        %343 = vadd.xlane.f32.xlu0 %v342
        %v344 = vpop.xlane.xlu0 %343
        %v345 = vsel %vm302, %v282, 0.0
        %346 = vadd.xlane.f32.xlu0 %v345
        %v347 = vpop.xlane.xlu0 %346
        %v348 = vsel %vm302, %v283, 0.0
        %349 = vadd.xlane.f32.xlu0 %v348
        %v350 = vpop.xlane.xlu0 %349
        %v351 = vsel %vm302, %v284, 0.0
        %352 = vadd.xlane.f32.xlu0 %v351
        %v353 = vpop.xlane.xlu0 %352
        %v354 = vsel %vm302, %v285, 0.0
        %355 = vadd.xlane.f32.xlu0 %v354
        %v356 = vpop.xlane.xlu0 %355
        %v357 = vsel %vm302, %v286, 0.0
        %358 = vadd.xlane.f32.xlu0 %v357
        %v359 = vpop.xlane.xlu0 %358
        %v360 = vsel %vm302, %v287, 0.0
        %361 = vadd.xlane.f32.xlu0 %v360
        %v362 = vpop.xlane.xlu0 %361
        %v363 = vsel %vm302, %v288, 0.0
        %364 = vadd.xlane.f32.xlu0 %v363
        %v365 = vpop.xlane.xlu0 %364
        %v366 = vsel %vm302, %v289, 0.0
        %367 = vadd.xlane.f32.xlu0 %v366
        %v368 = vpop.xlane.xlu0 %367
        %v369 = vsel %vm302, %v290, 0.0
        %370 = vadd.xlane.f32.xlu0 %v369
        %v371 = vpop.xlane.xlu0 %370
        %v372 = vsel %vm302, %v291, 0.0
        %373 = vadd.xlane.f32.xlu0 %v372
        %v374 = vpop.xlane.xlu0 %373
        %v375 = vsel %vm302, %v292, 0.0
        %376 = vadd.xlane.f32.xlu0 %v375
        %v377 = vpop.xlane.xlu0 %376
        %v378 = vsel %vm302, %v293, 0.0
        %379 = vadd.xlane.f32.xlu0 %v378
        %v380 = vpop.xlane.xlu0 %379
        %v381 = vsel %vm302, %v294, 0.0
        %382 = vadd.xlane.f32.xlu0 %v381
        %v383 = vpop.xlane.xlu0 %382
        %v384 = vsel %vm302, %v295, 0.0
        %385 = vadd.xlane.f32.xlu0 %v384
        %v386 = vpop.xlane.xlu0 %385
        %v387 = vsel %vm302, %v296, 0.0
        %388 = vadd.xlane.f32.xlu0 %v387
        %v389 = vpop.xlane.xlu0 %388
        %v390 = vsel %vm302, %v297, 0.0
        %391 = vadd.xlane.f32.xlu0 %v390
        %v392 = vpop.xlane.xlu0 %391
        %v393 = vsel %vm302, %v298, 0.0
        %394 = vadd.xlane.f32.xlu0 %v393
        %v395 = vpop.xlane.xlu0 %394
        %v396 = vsel %vm302, %v299, 0.0
        %397 = vadd.xlane.f32.xlu0 %v396
        %v398 = vpop.xlane.xlu0 %397
        %v399 = vrcp.pop 16.0
        %v400 = vmul.f32 16.0, %v399
        %v401 = vsub.f32 1.0, %v400
        %v402 = vmul.f32 %v399, %v401
        %v403 = vadd.f32 %v399, %v402
        %vm404 = vweird.f32 %v399
        %v405 = vsel %vm404, %v399, %v403
        %v406 = vmul.f32 %v305, %v405
        %v407 = vmul.f32 %v308, %v405
        %v408 = vmul.f32 %v311, %v405
        %v409 = vmul.f32 %v314, %v405
        %v410 = vmul.f32 %v317, %v405
        %v411 = vmul.f32 %v320, %v405
        %v412 = vmul.f32 %v323, %v405
        %v413 = vmul.f32 %v326, %v405
        %v414 = vmul.f32 %v329, %v405
        %v415 = vmul.f32 %v332, %v405
        %v416 = vmul.f32 %v335, %v405
        %v417 = vmul.f32 %v338, %v405
        %v418 = vmul.f32 %v341, %v405
        %v419 = vmul.f32 %v344, %v405
        %v420 = vmul.f32 %v347, %v405
        %v421 = vmul.f32 %v350, %v405
        %v422 = vmul.f32 %v353, %v405
        %v423 = vmul.f32 %v356, %v405
        %v424 = vmul.f32 %v359, %v405
        %v425 = vmul.f32 %v362, %v405
        %v426 = vmul.f32 %v365, %v405
        %v427 = vmul.f32 %v368, %v405
        %v428 = vmul.f32 %v371, %v405
        %v429 = vmul.f32 %v374, %v405
        %v430 = vmul.f32 %v377, %v405
        %v431 = vmul.f32 %v380, %v405
        %v432 = vmul.f32 %v383, %v405
        %v433 = vmul.f32 %v386, %v405
        %v434 = vmul.f32 %v389, %v405
        %v435 = vmul.f32 %v392, %v405
        %v436 = vmul.f32 %v395, %v405
        %v437 = vmul.f32 %v398, %v405
        %v438 = vsub.f32 %v268, %v406
        %v439 = vsub.f32 %v269, %v407
        %v440 = vsub.f32 %v270, %v408
        %v441 = vsub.f32 %v271, %v409
        %v442 = vsub.f32 %v272, %v410
        %v443 = vsub.f32 %v273, %v411
        %v444 = vsub.f32 %v274, %v412
        %v445 = vsub.f32 %v275, %v413
        %v446 = vsub.f32 %v276, %v414
        %v447 = vsub.f32 %v277, %v415
        %v448 = vsub.f32 %v278, %v416
        %v449 = vsub.f32 %v279, %v417
        %v450 = vsub.f32 %v280, %v418
        %v451 = vsub.f32 %v281, %v419
        %v452 = vsub.f32 %v282, %v420
        %v453 = vsub.f32 %v283, %v421
        %v454 = vsub.f32 %v284, %v422
        %v455 = vsub.f32 %v285, %v423
        %v456 = vsub.f32 %v286, %v424
        %v457 = vsub.f32 %v287, %v425
        %v458 = vsub.f32 %v288, %v426
        %v459 = vsub.f32 %v289, %v427
        %v460 = vsub.f32 %v290, %v428
        %v461 = vsub.f32 %v291, %v429
        %v462 = vsub.f32 %v292, %v430
        %v463 = vsub.f32 %v293, %v431
        %v464 = vsub.f32 %v294, %v432
        %v465 = vsub.f32 %v295, %v433
        %v466 = vsub.f32 %v296, %v434
        %v467 = vsub.f32 %v297, %v435
        %v468 = vsub.f32 %v298, %v436
        %v469 = vsub.f32 %v299, %v437
        %v470 = vmul.f32 %v438, %v438
        %v471 = vmul.f32 %v439, %v439
        %v472 = vmul.f32 %v440, %v440
        %v473 = vmul.f32 %v441, %v441
        %v474 = vmul.f32 %v442, %v442
        %v475 = vmul.f32 %v443, %v443
        %v476 = vmul.f32 %v444, %v444
        %v477 = vmul.f32 %v445, %v445
        %v478 = vmul.f32 %v446, %v446
        %v479 = vmul.f32 %v447, %v447
        %v480 = vmul.f32 %v448, %v448
        %v481 = vmul.f32 %v449, %v449
        %v482 = vmul.f32 %v450, %v450
        %v483 = vmul.f32 %v451, %v451
        %v484 = vmul.f32 %v452, %v452
        %v485 = vmul.f32 %v453, %v453
        %v486 = vmul.f32 %v454, %v454
        %v487 = vmul.f32 %v455, %v455
        %v488 = vmul.f32 %v456, %v456
        %v489 = vmul.f32 %v457, %v457
        %v490 = vmul.f32 %v458, %v458
        %v491 = vmul.f32 %v459, %v459
        %v492 = vmul.f32 %v460, %v460
        %v493 = vmul.f32 %v461, %v461
        %v494 = vmul.f32 %v462, %v462
        %v495 = vmul.f32 %v463, %v463
        %v496 = vmul.f32 %v464, %v464
        %v497 = vmul.f32 %v465, %v465
        %v498 = vmul.f32 %v466, %v466
        %v499 = vmul.f32 %v467, %v467
        %v500 = vmul.f32 %v468, %v468
        %v501 = vmul.f32 %v469, %v469
        %v502 = vsel %vm302, %v470, 0.0
        %503 = vadd.xlane.f32.xlu0 %v502
        %v504 = vpop.xlane.xlu0 %503
        %v505 = vsel %vm302, %v471, 0.0
        %506 = vadd.xlane.f32.xlu0 %v505
        %v507 = vpop.xlane.xlu0 %506
        %v508 = vsel %vm302, %v472, 0.0
        %509 = vadd.xlane.f32.xlu0 %v508
        %v510 = vpop.xlane.xlu0 %509
        %v511 = vsel %vm302, %v473, 0.0
        %512 = vadd.xlane.f32.xlu0 %v511
        %v513 = vpop.xlane.xlu0 %512
        %v514 = vsel %vm302, %v474, 0.0
        %515 = vadd.xlane.f32.xlu0 %v514
        %v516 = vpop.xlane.xlu0 %515
        %v517 = vsel %vm302, %v475, 0.0
        %518 = vadd.xlane.f32.xlu0 %v517
        %v519 = vpop.xlane.xlu0 %518
        %v520 = vsel %vm302, %v476, 0.0
        %521 = vadd.xlane.f32.xlu0 %v520
        %v522 = vpop.xlane.xlu0 %521
        %v523 = vsel %vm302, %v477, 0.0
        %524 = vadd.xlane.f32.xlu0 %v523
        %v525 = vpop.xlane.xlu0 %524
        %v526 = vsel %vm302, %v478, 0.0
        %527 = vadd.xlane.f32.xlu0 %v526
        %v528 = vpop.xlane.xlu0 %527
        %v529 = vsel %vm302, %v479, 0.0
        %530 = vadd.xlane.f32.xlu0 %v529
        %v531 = vpop.xlane.xlu0 %530
        %v532 = vsel %vm302, %v480, 0.0
        %533 = vadd.xlane.f32.xlu0 %v532
        %v534 = vpop.xlane.xlu0 %533
        %v535 = vsel %vm302, %v481, 0.0
        %536 = vadd.xlane.f32.xlu0 %v535
        %v537 = vpop.xlane.xlu0 %536
        %v538 = vsel %vm302, %v482, 0.0
        %539 = vadd.xlane.f32.xlu0 %v538
        %v540 = vpop.xlane.xlu0 %539
        %v541 = vsel %vm302, %v483, 0.0
        %542 = vadd.xlane.f32.xlu0 %v541
        %v543 = vpop.xlane.xlu0 %542
        %v544 = vsel %vm302, %v484, 0.0
        %545 = vadd.xlane.f32.xlu0 %v544
        %v546 = vpop.xlane.xlu0 %545
        %v547 = vsel %vm302, %v485, 0.0
        %548 = vadd.xlane.f32.xlu0 %v547
        %v549 = vpop.xlane.xlu0 %548
        %v550 = vsel %vm302, %v486, 0.0
        %551 = vadd.xlane.f32.xlu0 %v550
        %v552 = vpop.xlane.xlu0 %551
        %v553 = vsel %vm302, %v487, 0.0
        %554 = vadd.xlane.f32.xlu0 %v553
        %v555 = vpop.xlane.xlu0 %554
        %v556 = vsel %vm302, %v488, 0.0
        %557 = vadd.xlane.f32.xlu0 %v556
        %v558 = vpop.xlane.xlu0 %557
        %v559 = vsel %vm302, %v489, 0.0
        %560 = vadd.xlane.f32.xlu0 %v559
        %v561 = vpop.xlane.xlu0 %560
        %v562 = vsel %vm302, %v490, 0.0
        %563 = vadd.xlane.f32.xlu0 %v562
        %v564 = vpop.xlane.xlu0 %563
        %v565 = vsel %vm302, %v491, 0.0
        %566 = vadd.xlane.f32.xlu0 %v565
        %v567 = vpop.xlane.xlu0 %566
        %v568 = vsel %vm302, %v492, 0.0
        %569 = vadd.xlane.f32.xlu0 %v568
        %v570 = vpop.xlane.xlu0 %569
        %v571 = vsel %vm302, %v493, 0.0
        %572 = vadd.xlane.f32.xlu0 %v571
        %v573 = vpop.xlane.xlu0 %572
        %v574 = vsel %vm302, %v494, 0.0
        %575 = vadd.xlane.f32.xlu0 %v574
        %v576 = vpop.xlane.xlu0 %575
        %v577 = vsel %vm302, %v495, 0.0
        %578 = vadd.xlane.f32.xlu0 %v577
        %v579 = vpop.xlane.xlu0 %578
        %v580 = vsel %vm302, %v496, 0.0
        %581 = vadd.xlane.f32.xlu0 %v580
        %v582 = vpop.xlane.xlu0 %581
        %v583 = vsel %vm302, %v497, 0.0
        %584 = vadd.xlane.f32.xlu0 %v583
        %v585 = vpop.xlane.xlu0 %584
        %v586 = vsel %vm302, %v498, 0.0
        %587 = vadd.xlane.f32.xlu0 %v586
        %v588 = vpop.xlane.xlu0 %587
        %v589 = vsel %vm302, %v499, 0.0
        %590 = vadd.xlane.f32.xlu0 %v589
        %v591 = vpop.xlane.xlu0 %590
        %v592 = vsel %vm302, %v500, 0.0
        %593 = vadd.xlane.f32.xlu0 %v592
        %v594 = vpop.xlane.xlu0 %593
        %v595 = vsel %vm302, %v501, 0.0
        %596 = vadd.xlane.f32.xlu0 %v595
        %v597 = vpop.xlane.xlu0 %596
        %v598 = vmul.f32 %v504, %v405
        %v599 = vmul.f32 %v507, %v405
        %v600 = vmul.f32 %v510, %v405
        %v601 = vmul.f32 %v513, %v405
        %v602 = vmul.f32 %v516, %v405
        %v603 = vmul.f32 %v519, %v405
        %v604 = vmul.f32 %v522, %v405
        %v605 = vmul.f32 %v525, %v405
        %v606 = vmul.f32 %v528, %v405
        %v607 = vmul.f32 %v531, %v405
        %v608 = vmul.f32 %v534, %v405
        %v609 = vmul.f32 %v537, %v405
        %v610 = vmul.f32 %v540, %v405
        %v611 = vmul.f32 %v543, %v405
        %v612 = vmul.f32 %v546, %v405
        %v613 = vmul.f32 %v549, %v405
        %v614 = vmul.f32 %v552, %v405
        %v615 = vmul.f32 %v555, %v405
        %v616 = vmul.f32 %v558, %v405
        %v617 = vmul.f32 %v561, %v405
        %v618 = vmul.f32 %v564, %v405
        %v619 = vmul.f32 %v567, %v405
        %v620 = vmul.f32 %v570, %v405
        %v621 = vmul.f32 %v573, %v405
        %v622 = vmul.f32 %v576, %v405
        %v623 = vmul.f32 %v579, %v405
        %v624 = vmul.f32 %v582, %v405
        %v625 = vmul.f32 %v585, %v405
        %v626 = vmul.f32 %v588, %v405
        %v627 = vmul.f32 %v591, %v405
        %v628 = vmul.f32 %v594, %v405
        %v629 = vmul.f32 %v597, %v405
        %v630 = vadd.f32 %v598, 1e-05
        %v631 = vadd.f32 %v599, 1e-05
        %v632 = vadd.f32 %v600, 1e-05
        %v633 = vadd.f32 %v601, 1e-05
        %v634 = vadd.f32 %v602, 1e-05
        %v635 = vadd.f32 %v603, 1e-05
        %v636 = vadd.f32 %v604, 1e-05
        %v637 = vadd.f32 %v605, 1e-05
        %v638 = vadd.f32 %v606, 1e-05
        %v639 = vadd.f32 %v607, 1e-05
        %v640 = vadd.f32 %v608, 1e-05
        %v641 = vadd.f32 %v609, 1e-05
        %v642 = vadd.f32 %v610, 1e-05
        %v643 = vadd.f32 %v611, 1e-05
        %v644 = vadd.f32 %v612, 1e-05
        %v645 = vadd.f32 %v613, 1e-05
        %v646 = vadd.f32 %v614, 1e-05
        %v647 = vadd.f32 %v615, 1e-05
        %v648 = vadd.f32 %v616, 1e-05
        %v649 = vadd.f32 %v617, 1e-05
        %v650 = vadd.f32 %v618, 1e-05
        %v651 = vadd.f32 %v619, 1e-05
        %v652 = vadd.f32 %v620, 1e-05
        %v653 = vadd.f32 %v621, 1e-05
        %v654 = vadd.f32 %v622, 1e-05
        %v655 = vadd.f32 %v623, 1e-05
        %v656 = vadd.f32 %v624, 1e-05
        %v657 = vadd.f32 %v625, 1e-05
        %v658 = vadd.f32 %v626, 1e-05
        %v659 = vadd.f32 %v627, 1e-05
        %v660 = vadd.f32 %v628, 1e-05
        %v661 = vadd.f32 %v629, 1e-05
        %v662 = vrsqrt.pop %v630
        %v663 = vmul.f32 %v662, %v630
        %v664 = vmul.f32 %v663, %v662
        %v665 = vmul.f32 0.5, %v664
        %v666 = vsub.f32 1.5, %v665
        %v667 = vmul.f32 %v662, %v666
        %vm668 = vweird.f32 %v630
        %vm669 = vweird.f32 %v662
        %vm670 = vmor %vm668, %vm669
        %v671 = vsel %vm670, %v662, %v667
        %v672 = vrsqrt.pop %v631
        %v673 = vmul.f32 %v672, %v631
        %v674 = vmul.f32 %v673, %v672
        %v675 = vmul.f32 0.5, %v674
        %v676 = vsub.f32 1.5, %v675
        %v677 = vmul.f32 %v672, %v676
        %vm678 = vweird.f32 %v631
        %vm679 = vweird.f32 %v672
        %vm680 = vmor %vm678, %vm679
        %v681 = vsel %vm680, %v672, %v677
        %v682 = vrsqrt.pop %v632
        %v683 = vmul.f32 %v682, %v632
        %v684 = vmul.f32 %v683, %v682
        %v685 = vmul.f32 0.5, %v684
        %v686 = vsub.f32 1.5, %v685
        %v687 = vmul.f32 %v682, %v686
        %vm688 = vweird.f32 %v632
        %vm689 = vweird.f32 %v682
        %vm690 = vmor %vm688, %vm689
        %v691 = vsel %vm690, %v682, %v687
        %v692 = vrsqrt.pop %v633
        %v693 = vmul.f32 %v692, %v633
        %v694 = vmul.f32 %v693, %v692
        %v695 = vmul.f32 0.5, %v694
        %v696 = vsub.f32 1.5, %v695
        %v697 = vmul.f32 %v692, %v696
        %vm698 = vweird.f32 %v633
        %vm699 = vweird.f32 %v692
        %vm700 = vmor %vm698, %vm699
        %v701 = vsel %vm700, %v692, %v697
        %v702 = vrsqrt.pop %v634
        %v703 = vmul.f32 %v702, %v634
        %v704 = vmul.f32 %v703, %v702
        %v705 = vmul.f32 0.5, %v704
        %v706 = vsub.f32 1.5, %v705
        %v707 = vmul.f32 %v702, %v706
        %vm708 = vweird.f32 %v634
        %vm709 = vweird.f32 %v702
        %vm710 = vmor %vm708, %vm709
        %v711 = vsel %vm710, %v702, %v707
        %v712 = vrsqrt.pop %v635
        %v713 = vmul.f32 %v712, %v635
        %v714 = vmul.f32 %v713, %v712
        %v715 = vmul.f32 0.5, %v714
        %v716 = vsub.f32 1.5, %v715
        %v717 = vmul.f32 %v712, %v716
        %vm718 = vweird.f32 %v635
        %vm719 = vweird.f32 %v712
        %vm720 = vmor %vm718, %vm719
        %v721 = vsel %vm720, %v712, %v717
        %v722 = vrsqrt.pop %v636
        %v723 = vmul.f32 %v722, %v636
        %v724 = vmul.f32 %v723, %v722
        %v725 = vmul.f32 0.5, %v724
        %v726 = vsub.f32 1.5, %v725
        %v727 = vmul.f32 %v722, %v726
        %vm728 = vweird.f32 %v636
        %vm729 = vweird.f32 %v722
        %vm730 = vmor %vm728, %vm729
        %v731 = vsel %vm730, %v722, %v727
        %v732 = vrsqrt.pop %v637
        %v733 = vmul.f32 %v732, %v637
        %v734 = vmul.f32 %v733, %v732
        %v735 = vmul.f32 0.5, %v734
        %v736 = vsub.f32 1.5, %v735
        %v737 = vmul.f32 %v732, %v736
        %vm738 = vweird.f32 %v637
        %vm739 = vweird.f32 %v732
        %vm740 = vmor %vm738, %vm739
        %v741 = vsel %vm740, %v732, %v737
        %v742 = vrsqrt.pop %v638
        %v743 = vmul.f32 %v742, %v638
        %v744 = vmul.f32 %v743, %v742
        %v745 = vmul.f32 0.5, %v744
        %v746 = vsub.f32 1.5, %v745
        %v747 = vmul.f32 %v742, %v746
        %vm748 = vweird.f32 %v638
        %vm749 = vweird.f32 %v742
        %vm750 = vmor %vm748, %vm749
        %v751 = vsel %vm750, %v742, %v747
        %v752 = vrsqrt.pop %v639
        %v753 = vmul.f32 %v752, %v639
        %v754 = vmul.f32 %v753, %v752
        %v755 = vmul.f32 0.5, %v754
        %v756 = vsub.f32 1.5, %v755
        %v757 = vmul.f32 %v752, %v756
        %vm758 = vweird.f32 %v639
        %vm759 = vweird.f32 %v752
        %vm760 = vmor %vm758, %vm759
        %v761 = vsel %vm760, %v752, %v757
        %v762 = vrsqrt.pop %v640
        %v763 = vmul.f32 %v762, %v640
        %v764 = vmul.f32 %v763, %v762
        %v765 = vmul.f32 0.5, %v764
        %v766 = vsub.f32 1.5, %v765
        %v767 = vmul.f32 %v762, %v766
        %vm768 = vweird.f32 %v640
        %vm769 = vweird.f32 %v762
        %vm770 = vmor %vm768, %vm769
        %v771 = vsel %vm770, %v762, %v767
        %v772 = vrsqrt.pop %v641
        %v773 = vmul.f32 %v772, %v641
        %v774 = vmul.f32 %v773, %v772
        %v775 = vmul.f32 0.5, %v774
        %v776 = vsub.f32 1.5, %v775
        %v777 = vmul.f32 %v772, %v776
        %vm778 = vweird.f32 %v641
        %vm779 = vweird.f32 %v772
        %vm780 = vmor %vm778, %vm779
        %v781 = vsel %vm780, %v772, %v777
        %v782 = vrsqrt.pop %v642
        %v783 = vmul.f32 %v782, %v642
        %v784 = vmul.f32 %v783, %v782
        %v785 = vmul.f32 0.5, %v784
        %v786 = vsub.f32 1.5, %v785
        %v787 = vmul.f32 %v782, %v786
        %vm788 = vweird.f32 %v642
        %vm789 = vweird.f32 %v782
        %vm790 = vmor %vm788, %vm789
        %v791 = vsel %vm790, %v782, %v787
        %v792 = vrsqrt.pop %v643
        %v793 = vmul.f32 %v792, %v643
        %v794 = vmul.f32 %v793, %v792
        %v795 = vmul.f32 0.5, %v794
        %v796 = vsub.f32 1.5, %v795
        %v797 = vmul.f32 %v792, %v796
        %vm798 = vweird.f32 %v643
        %vm799 = vweird.f32 %v792
        %vm800 = vmor %vm798, %vm799
        %v801 = vsel %vm800, %v792, %v797
        %v802 = vrsqrt.pop %v644
        %v803 = vmul.f32 %v802, %v644
        %v804 = vmul.f32 %v803, %v802
        %v805 = vmul.f32 0.5, %v804
        %v806 = vsub.f32 1.5, %v805
        %v807 = vmul.f32 %v802, %v806
        %vm808 = vweird.f32 %v644
        %vm809 = vweird.f32 %v802
        %vm810 = vmor %vm808, %vm809
        %v811 = vsel %vm810, %v802, %v807
        %v812 = vrsqrt.pop %v645
        %v813 = vmul.f32 %v812, %v645
        %v814 = vmul.f32 %v813, %v812
        %v815 = vmul.f32 0.5, %v814
        %v816 = vsub.f32 1.5, %v815
        %v817 = vmul.f32 %v812, %v816
        %vm818 = vweird.f32 %v645
        %vm819 = vweird.f32 %v812
        %vm820 = vmor %vm818, %vm819
        %v821 = vsel %vm820, %v812, %v817
        %v822 = vrsqrt.pop %v646
        %v823 = vmul.f32 %v822, %v646
        %v824 = vmul.f32 %v823, %v822
        %v825 = vmul.f32 0.5, %v824
        %v826 = vsub.f32 1.5, %v825
        %v827 = vmul.f32 %v822, %v826
        %vm828 = vweird.f32 %v646
        %vm829 = vweird.f32 %v822
        %vm830 = vmor %vm828, %vm829
        %v831 = vsel %vm830, %v822, %v827
        %v832 = vrsqrt.pop %v647
        %v833 = vmul.f32 %v832, %v647
        %v834 = vmul.f32 %v833, %v832
        %v835 = vmul.f32 0.5, %v834
        %v836 = vsub.f32 1.5, %v835
        %v837 = vmul.f32 %v832, %v836
        %vm838 = vweird.f32 %v647
        %vm839 = vweird.f32 %v832
        %vm840 = vmor %vm838, %vm839
        %v841 = vsel %vm840, %v832, %v837
        %v842 = vrsqrt.pop %v648
        %v843 = vmul.f32 %v842, %v648
        %v844 = vmul.f32 %v843, %v842
        %v845 = vmul.f32 0.5, %v844
        %v846 = vsub.f32 1.5, %v845
        %v847 = vmul.f32 %v842, %v846
        %vm848 = vweird.f32 %v648
        %vm849 = vweird.f32 %v842
        %vm850 = vmor %vm848, %vm849
        %v851 = vsel %vm850, %v842, %v847
        %v852 = vrsqrt.pop %v649
        %v853 = vmul.f32 %v852, %v649
        %v854 = vmul.f32 %v853, %v852
        %v855 = vmul.f32 0.5, %v854
        %v856 = vsub.f32 1.5, %v855
        %v857 = vmul.f32 %v852, %v856
        %vm858 = vweird.f32 %v649
        %vm859 = vweird.f32 %v852
        %vm860 = vmor %vm858, %vm859
        %v861 = vsel %vm860, %v852, %v857
        %v862 = vrsqrt.pop %v650
        %v863 = vmul.f32 %v862, %v650
        %v864 = vmul.f32 %v863, %v862
        %v865 = vmul.f32 0.5, %v864
        %v866 = vsub.f32 1.5, %v865
        %v867 = vmul.f32 %v862, %v866
        %vm868 = vweird.f32 %v650
        %vm869 = vweird.f32 %v862
        %vm870 = vmor %vm868, %vm869
        %v871 = vsel %vm870, %v862, %v867
        %v872 = vrsqrt.pop %v651
        %v873 = vmul.f32 %v872, %v651
        %v874 = vmul.f32 %v873, %v872
        %v875 = vmul.f32 0.5, %v874
        %v876 = vsub.f32 1.5, %v875
        %v877 = vmul.f32 %v872, %v876
        %vm878 = vweird.f32 %v651
        %vm879 = vweird.f32 %v872
        %vm880 = vmor %vm878, %vm879
        %v881 = vsel %vm880, %v872, %v877
        %v882 = vrsqrt.pop %v652
        %v883 = vmul.f32 %v882, %v652
        %v884 = vmul.f32 %v883, %v882
        %v885 = vmul.f32 0.5, %v884
        %v886 = vsub.f32 1.5, %v885
        %v887 = vmul.f32 %v882, %v886
        %vm888 = vweird.f32 %v652
        %vm889 = vweird.f32 %v882
        %vm890 = vmor %vm888, %vm889
        %v891 = vsel %vm890, %v882, %v887
        %v892 = vrsqrt.pop %v653
        %v893 = vmul.f32 %v892, %v653
        %v894 = vmul.f32 %v893, %v892
        %v895 = vmul.f32 0.5, %v894
        %v896 = vsub.f32 1.5, %v895
        %v897 = vmul.f32 %v892, %v896
        %vm898 = vweird.f32 %v653
        %vm899 = vweird.f32 %v892
        %vm900 = vmor %vm898, %vm899
        %v901 = vsel %vm900, %v892, %v897
        %v902 = vrsqrt.pop %v654
        %v903 = vmul.f32 %v902, %v654
        %v904 = vmul.f32 %v903, %v902
        %v905 = vmul.f32 0.5, %v904
        %v906 = vsub.f32 1.5, %v905
        %v907 = vmul.f32 %v902, %v906
        %vm908 = vweird.f32 %v654
        %vm909 = vweird.f32 %v902
        %vm910 = vmor %vm908, %vm909
        %v911 = vsel %vm910, %v902, %v907
        %v912 = vrsqrt.pop %v655
        %v913 = vmul.f32 %v912, %v655
        %v914 = vmul.f32 %v913, %v912
        %v915 = vmul.f32 0.5, %v914
        %v916 = vsub.f32 1.5, %v915
        %v917 = vmul.f32 %v912, %v916
        %vm918 = vweird.f32 %v655
        %vm919 = vweird.f32 %v912
        %vm920 = vmor %vm918, %vm919
        %v921 = vsel %vm920, %v912, %v917
        %v922 = vrsqrt.pop %v656
        %v923 = vmul.f32 %v922, %v656
        %v924 = vmul.f32 %v923, %v922
        %v925 = vmul.f32 0.5, %v924
        %v926 = vsub.f32 1.5, %v925
        %v927 = vmul.f32 %v922, %v926
        %vm928 = vweird.f32 %v656
        %vm929 = vweird.f32 %v922
        %vm930 = vmor %vm928, %vm929
        %v931 = vsel %vm930, %v922, %v927
        %v932 = vrsqrt.pop %v657
        %v933 = vmul.f32 %v932, %v657
        %v934 = vmul.f32 %v933, %v932
        %v935 = vmul.f32 0.5, %v934
        %v936 = vsub.f32 1.5, %v935
        %v937 = vmul.f32 %v932, %v936
        %vm938 = vweird.f32 %v657
        %vm939 = vweird.f32 %v932
        %vm940 = vmor %vm938, %vm939
        %v941 = vsel %vm940, %v932, %v937
        %v942 = vrsqrt.pop %v658
        %v943 = vmul.f32 %v942, %v658
        %v944 = vmul.f32 %v943, %v942
        %v945 = vmul.f32 0.5, %v944
        %v946 = vsub.f32 1.5, %v945
        %v947 = vmul.f32 %v942, %v946
        %vm948 = vweird.f32 %v658
        %vm949 = vweird.f32 %v942
        %vm950 = vmor %vm948, %vm949
        %v951 = vsel %vm950, %v942, %v947
        %v952 = vrsqrt.pop %v659
        %v953 = vmul.f32 %v952, %v659
        %v954 = vmul.f32 %v953, %v952
        %v955 = vmul.f32 0.5, %v954
        %v956 = vsub.f32 1.5, %v955
        %v957 = vmul.f32 %v952, %v956
        %vm958 = vweird.f32 %v659
        %vm959 = vweird.f32 %v952
        %vm960 = vmor %vm958, %vm959
        %v961 = vsel %vm960, %v952, %v957
        %v962 = vrsqrt.pop %v660
        %v963 = vmul.f32 %v962, %v660
        %v964 = vmul.f32 %v963, %v962
        %v965 = vmul.f32 0.5, %v964
        %v966 = vsub.f32 1.5, %v965
        %v967 = vmul.f32 %v962, %v966
        %vm968 = vweird.f32 %v660
        %vm969 = vweird.f32 %v962
        %vm970 = vmor %vm968, %vm969
        %v971 = vsel %vm970, %v962, %v967
        %v972 = vrsqrt.pop %v661
        %v973 = vmul.f32 %v972, %v661
        %v974 = vmul.f32 %v973, %v972
        %v975 = vmul.f32 0.5, %v974
        %v976 = vsub.f32 1.5, %v975
        %v977 = vmul.f32 %v972, %v976
        %vm978 = vweird.f32 %v661
        %vm979 = vweird.f32 %v972
        %vm980 = vmor %vm978, %vm979
        %v981 = vsel %vm980, %v972, %v977
        %v982 = vmul.f32 %v438, %v671
        %v983 = vmul.f32 %v439, %v681
        %v984 = vmul.f32 %v440, %v691
        %v985 = vmul.f32 %v441, %v701
        %v986 = vmul.f32 %v442, %v711
        %v987 = vmul.f32 %v443, %v721
        %v988 = vmul.f32 %v444, %v731
        %v989 = vmul.f32 %v445, %v741
        %v990 = vmul.f32 %v446, %v751
        %v991 = vmul.f32 %v447, %v761
        %v992 = vmul.f32 %v448, %v771
        %v993 = vmul.f32 %v449, %v781
        %v994 = vmul.f32 %v450, %v791
        %v995 = vmul.f32 %v451, %v801
        %v996 = vmul.f32 %v452, %v811
        %v997 = vmul.f32 %v453, %v821
        %v998 = vmul.f32 %v454, %v831
        %v999 = vmul.f32 %v455, %v841
        %v1000 = vmul.f32 %v456, %v851
        %v1001 = vmul.f32 %v457, %v861
        %v1002 = vmul.f32 %v458, %v871
        %v1003 = vmul.f32 %v459, %v881
        %v1004 = vmul.f32 %v460, %v891
        %v1005 = vmul.f32 %v461, %v901
        %v1006 = vmul.f32 %v462, %v911
        %v1007 = vmul.f32 %v463, %v921
        %v1008 = vmul.f32 %v464, %v931
        %v1009 = vmul.f32 %v465, %v941
        %v1010 = vmul.f32 %v466, %v951
        %v1011 = vmul.f32 %v467, %v961
        %v1012 = vmul.f32 %v468, %v971
        %v1013 = vmul.f32 %v469, %v981
        %v1015 = vperm.slane %v300, 0
        %v1017 = vmul.f32 %v982, %v1015
        %v1018 = vmul.f32 %v983, %v1015
        %v1019 = vmul.f32 %v984, %v1015
        %v1020 = vmul.f32 %v985, %v1015
        %v1021 = vmul.f32 %v986, %v1015
        %v1022 = vmul.f32 %v987, %v1015
        %v1023 = vmul.f32 %v988, %v1015
        %v1024 = vmul.f32 %v989, %v1015
        %v1025 = vmul.f32 %v990, %v1015
        %v1026 = vmul.f32 %v991, %v1015
        %v1027 = vmul.f32 %v992, %v1015
        %v1028 = vmul.f32 %v993, %v1015
        %v1029 = vmul.f32 %v994, %v1015
        %v1030 = vmul.f32 %v995, %v1015
        %v1031 = vmul.f32 %v996, %v1015
        %v1032 = vmul.f32 %v997, %v1015
        %v1033 = vmul.f32 %v998, %v1015
        %v1034 = vmul.f32 %v999, %v1015
        %v1035 = vmul.f32 %v1000, %v1015
        %v1036 = vmul.f32 %v1001, %v1015
        %v1037 = vmul.f32 %v1002, %v1015
        %v1038 = vmul.f32 %v1003, %v1015
        %v1039 = vmul.f32 %v1004, %v1015
        %v1040 = vmul.f32 %v1005, %v1015
        %v1041 = vmul.f32 %v1006, %v1015
        %v1042 = vmul.f32 %v1007, %v1015
        %v1043 = vmul.f32 %v1008, %v1015
        %v1044 = vmul.f32 %v1009, %v1015
        %v1045 = vmul.f32 %v1010, %v1015
        %v1046 = vmul.f32 %v1011, %v1015
        %v1047 = vmul.f32 %v1012, %v1015
        %v1048 = vmul.f32 %v1013, %v1015
        %v1050 = vperm.slane %v301, 0
        %v1052 = vadd.f32 %v1017, %v1050
        %v1053 = vadd.f32 %v1018, %v1050
        %v1054 = vadd.f32 %v1019, %v1050
        %v1055 = vadd.f32 %v1020, %v1050
        %v1056 = vadd.f32 %v1021, %v1050
        %v1057 = vadd.f32 %v1022, %v1050
        %v1058 = vadd.f32 %v1023, %v1050
        %v1059 = vadd.f32 %v1024, %v1050
        %v1060 = vadd.f32 %v1025, %v1050
        %v1061 = vadd.f32 %v1026, %v1050
        %v1062 = vadd.f32 %v1027, %v1050
        %v1063 = vadd.f32 %v1028, %v1050
        %v1064 = vadd.f32 %v1029, %v1050
        %v1065 = vadd.f32 %v1030, %v1050
        %v1066 = vadd.f32 %v1031, %v1050
        %v1067 = vadd.f32 %v1032, %v1050
        %v1068 = vadd.f32 %v1033, %v1050
        %v1069 = vadd.f32 %v1034, %v1050
        %v1070 = vadd.f32 %v1035, %v1050
        %v1071 = vadd.f32 %v1036, %v1050
        %v1072 = vadd.f32 %v1037, %v1050
        %v1073 = vadd.f32 %v1038, %v1050
        %v1074 = vadd.f32 %v1039, %v1050
        %v1075 = vadd.f32 %v1040, %v1050
        %v1076 = vadd.f32 %v1041, %v1050
        %v1077 = vadd.f32 %v1042, %v1050
        %v1078 = vadd.f32 %v1043, %v1050
        %v1079 = vadd.f32 %v1044, %v1050
        %v1080 = vadd.f32 %v1045, %v1050
        %v1081 = vadd.f32 %v1046, %v1050
        %v1082 = vadd.f32 %v1047, %v1050
        %v1083 = vadd.f32 %v1048, %v1050
        %v1084 = vpack.c.bf16 %v1053, %v1052
        %v1085 = vpack.c.bf16 %v1055, %v1054
        %v1086 = vpack.c.bf16 %v1057, %v1056
        %v1087 = vpack.c.bf16 %v1059, %v1058
        %v1088 = vpack.c.bf16 %v1061, %v1060
        %v1089 = vpack.c.bf16 %v1063, %v1062
        %v1090 = vpack.c.bf16 %v1065, %v1064
        %v1091 = vpack.c.bf16 %v1067, %v1066
        %v1092 = vpack.c.bf16 %v1069, %v1068
        %v1093 = vpack.c.bf16 %v1071, %v1070
        %v1094 = vpack.c.bf16 %v1073, %v1072
        %v1095 = vpack.c.bf16 %v1075, %v1074
        %v1096 = vpack.c.bf16 %v1077, %v1076
        %v1097 = vpack.c.bf16 %v1079, %v1078
        %v1098 = vpack.c.bf16 %v1081, %v1080
        %v1099 = vpack.c.bf16 %v1083, %v1082
        %v1100 = vld [vmem:[#allocation7] sm:$0xf]
        %v1101 = vpack.c.bf16 %v1100, %v1100
        %v1103 = vsel %vm302, %v1101, 0
        %v1106 = vsel %vm302, %v1084, 0
        %v1109 = vsel %vm302, %v1085, 0
        %v1112 = vsel %vm302, %v1086, 0
        %v1115 = vsel %vm302, %v1087, 0
        %v1118 = vsel %vm302, %v1088, 0
        %v1121 = vsel %vm302, %v1089, 0
        %v1124 = vsel %vm302, %v1090, 0
        %v1127 = vsel %vm302, %v1091, 0
        %v1130 = vsel %vm302, %v1092, 0
        %v1133 = vsel %vm302, %v1093, 0
        %v1136 = vsel %vm302, %v1094, 0
        %v1139 = vsel %vm302, %v1095, 0
        %v1142 = vsel %vm302, %v1096, 0
        %v1145 = vsel %vm302, %v1097, 0
        %v1148 = vsel %vm302, %v1098, 0
        %v1151 = vsel %vm302, %v1099, 0
        %1153 = vmatpush.bf16.xpose.msra.mxu0 %v1127
        %1154 = vmatpush.bf16.xpose.msra.mxu0 %v1124
        %1155 = vmatpush.bf16.xpose.msra.mxu0 %v1121
        %1156 = vmatpush.bf16.xpose.msra.mxu0 %v1118
        %1157 = vmatpush.bf16.xpose.msra.mxu0 %v1115
        %1158 = vmatpush.bf16.xpose.msra.mxu0 %v1112
        %1159 = vmatpush.bf16.xpose.msra.mxu0 %v1109
        %1160 = vmatpush.bf16.xpose.msra.mxu0 %v1106
        %1161 = vmatmul.bf16.gmra.mxu0 %v1103
        %v1162 = vpop.f32.mrf.mxu0
        %v1163 = vadd.f32 0.0, %v1162
        %v1164 = vpop.f32.mrf.mxu0
        %1165 = vdwg.mxu0
        %1166 = vmatpush.bf16.xpose.msra.mxu0 %v1151
        %1167 = vmatpush.bf16.xpose.msra.mxu0 %v1148
        %1168 = vmatpush.bf16.xpose.msra.mxu0 %v1145
        %1169 = vmatpush.bf16.xpose.msra.mxu0 %v1142
        %1170 = vmatpush.bf16.xpose.msra.mxu0 %v1139
        %1171 = vmatpush.bf16.xpose.msra.mxu0 %v1136
        %1172 = vmatpush.bf16.xpose.msra.mxu0 %v1133
        %1173 = vmatpush.bf16.xpose.msra.mxu0 %v1130
        %1174 = vmatmul.bf16.gmra.mxu0 %v1103
        %v1175 = vpop.f32.mrf.mxu0
        %v1176 = vadd.f32 0.0, %v1175
        %v1177 = vpop.f32.mrf.mxu0
        %1178 = vdwg.mxu0
        %1180 = vrot.lane.b32.xlu0 %v1163, 112
        %v1181 = vpop.permute.xlu0 %1180
        %1183 = vrot.lane.b32.xlu0 %v1163, 96
        %v1184 = vpop.permute.xlu0 %1183
        %1186 = vrot.lane.b32.xlu0 %v1163, 80
        %v1187 = vpop.permute.xlu0 %1186
        %1189 = vrot.lane.b32.xlu0 %v1163, 64
        %v1190 = vpop.permute.xlu0 %1189
        %1192 = vrot.lane.b32.xlu0 %v1163, 48
        %v1193 = vpop.permute.xlu0 %1192
        %1195 = vrot.lane.b32.xlu0 %v1163, 32
        %v1196 = vpop.permute.xlu0 %1195
        %1198 = vrot.lane.b32.xlu0 %v1163, 16
        %v1199 = vpop.permute.xlu0 %1198
        %1202 = vrot.lane.b32.xlu0 %v1176, 112
        %v1203 = vpop.permute.xlu0 %1202
        %1205 = vrot.lane.b32.xlu0 %v1176, 96
        %v1206 = vpop.permute.xlu0 %1205
        %1208 = vrot.lane.b32.xlu0 %v1176, 80
        %v1209 = vpop.permute.xlu0 %1208
        %1211 = vrot.lane.b32.xlu0 %v1176, 64
        %v1212 = vpop.permute.xlu0 %1211
        %1214 = vrot.lane.b32.xlu0 %v1176, 48
        %v1215 = vpop.permute.xlu0 %1214
        %1217 = vrot.lane.b32.xlu0 %v1176, 32
        %v1218 = vpop.permute.xlu0 %1217
        %1220 = vrot.lane.b32.xlu0 %v1176, 16
        %v1221 = vpop.permute.xlu0 %1220
        %v1223 = vrot.slane %v1184, 4
        %vm1224 = vcmask 1047556
        %v1225 = vsel %vm1224, %v1223, %v1163
        %v1227 = vunpack.c.l.s4 1983009808
        %v1228 = vunpack.c.0.s8 %v1227
        %v1229 = vperm.slane %v1225, %v1228
        %v1230 = vrot.slane %v1187, 4
        %v1231 = vsel %vm1224, %v1230, %v1181
        %v1233 = vunpack.c.l.s4 1983009808
        %v1234 = vunpack.c.0.s8 %v1233
        %v1235 = vperm.slane %v1231, %v1234
        %v1236 = vrot.slane %v1196, 4
        %v1237 = vsel %vm1224, %v1236, %v1190
        %v1239 = vunpack.c.l.s4 1983009808
        %v1240 = vunpack.c.0.s8 %v1239
        %v1241 = vperm.slane %v1237, %v1240
        %v1242 = vrot.slane %v1199, 4
        %v1243 = vsel %vm1224, %v1242, %v1193
        %v1245 = vunpack.c.l.s4 1983009808
        %v1246 = vunpack.c.0.s8 %v1245
        %v1247 = vperm.slane %v1243, %v1246
        %v1248 = vrot.slane %v1235, 4
        %v1249 = vsel %vm1224, %v1248, %v1229
        %v1250 = vrot.slane %v1229, 4
        %v1251 = vsel %vm1224, %v1235, %v1250
        %v1253 = vunpack.c.l.s4 1934713408
        %v1254 = vunpack.c.0.s8 %v1253
        %v1255 = vperm.slane %v1249, %v1254
        %v1257 = vunpack.c.l.s4 1934713408
        %v1258 = vunpack.c.0.s8 %v1257
        %v1259 = vperm.slane %v1251, %v1258
        %v1260 = vrot.slane %v1247, 4
        %v1261 = vsel %vm1224, %v1260, %v1241
        %v1262 = vrot.slane %v1241, 4
        %v1263 = vsel %vm1224, %v1247, %v1262
        %v1265 = vunpack.c.l.s4 1934713408
        %v1266 = vunpack.c.0.s8 %v1265
        %v1267 = vperm.slane %v1261, %v1266
        %v1269 = vunpack.c.l.s4 1934713408
        %v1270 = vunpack.c.0.s8 %v1269
        %v1271 = vperm.slane %v1263, %v1270
        %v1272 = vrot.slane %v1267, 4
        %v1273 = vsel %vm1224, %v1272, %v1255
        %v1274 = vrot.slane %v1255, 4
        %v1275 = vsel %vm1224, %v1267, %v1274
        %v1276 = vrot.slane %v1271, 4
        %v1277 = vsel %vm1224, %v1276, %v1259
        %v1278 = vrot.slane %v1259, 4
        %v1279 = vsel %vm1224, %v1271, %v1278
        %v1280 = vrot.slane %v1206, 4
        %v1281 = vsel %vm1224, %v1280, %v1176
        %v1283 = vunpack.c.l.s4 1983009808
        %v1284 = vunpack.c.0.s8 %v1283
        %v1285 = vperm.slane %v1281, %v1284
        %v1286 = vrot.slane %v1209, 4
        %v1287 = vsel %vm1224, %v1286, %v1203
        %v1289 = vunpack.c.l.s4 1983009808
        %v1290 = vunpack.c.0.s8 %v1289
        %v1291 = vperm.slane %v1287, %v1290
        %v1292 = vrot.slane %v1218, 4
        %v1293 = vsel %vm1224, %v1292, %v1212
        %v1295 = vunpack.c.l.s4 1983009808
        %v1296 = vunpack.c.0.s8 %v1295
        %v1297 = vperm.slane %v1293, %v1296
        %v1298 = vrot.slane %v1221, 4
        %v1299 = vsel %vm1224, %v1298, %v1215
        %v1301 = vunpack.c.l.s4 1983009808
        %v1302 = vunpack.c.0.s8 %v1301
        %v1303 = vperm.slane %v1299, %v1302
        %v1304 = vrot.slane %v1291, 4
        %v1305 = vsel %vm1224, %v1304, %v1285
        %v1306 = vrot.slane %v1285, 4
        %v1307 = vsel %vm1224, %v1291, %v1306
        %v1309 = vunpack.c.l.s4 1934713408
        %v1310 = vunpack.c.0.s8 %v1309
        %v1311 = vperm.slane %v1305, %v1310
        %v1313 = vunpack.c.l.s4 1934713408
        %v1314 = vunpack.c.0.s8 %v1313
        %v1315 = vperm.slane %v1307, %v1314
        %v1316 = vrot.slane %v1303, 4
        %v1317 = vsel %vm1224, %v1316, %v1297
        %v1318 = vrot.slane %v1297, 4
        %v1319 = vsel %vm1224, %v1303, %v1318
        %v1321 = vunpack.c.l.s4 1934713408
        %v1322 = vunpack.c.0.s8 %v1321
        %v1323 = vperm.slane %v1317, %v1322
        %v1325 = vunpack.c.l.s4 1934713408
        %v1326 = vunpack.c.0.s8 %v1325
        %v1327 = vperm.slane %v1319, %v1326
        %v1328 = vrot.slane %v1323, 4
        %v1329 = vsel %vm1224, %v1328, %v1311
        %v1330 = vrot.slane %v1311, 4
        %v1331 = vsel %vm1224, %v1323, %v1330
        %v1332 = vrot.slane %v1327, 4
        %v1333 = vsel %vm1224, %v1332, %v1315
        %v1334 = vrot.slane %v1315, 4
        %v1335 = vsel %vm1224, %v1327, %v1334
        %v1336 = vpack.c.bf16 %v1273, %v1273
        %v1337 = vpack.c.bf16 %v1329, %v1329
        %v1338 = vpack.c.bf16 %v1275, %v1275
        %v1339 = vpack.c.bf16 %v1331, %v1331
        %v1340 = vpack.c.bf16 %v1277, %v1277
        %v1341 = vpack.c.bf16 %v1333, %v1333
        %v1342 = vpack.c.bf16 %v1279, %v1279
        %v1343 = vpack.c.bf16 %v1335, %v1335
        %vm1344 = vcmask 125952
        %1345 = vst.msk [vmem:[%s265] sm:$0xf] %vm1344, %v1336
        %1346 = vst.msk [vmem:[%s265 + $0x4] sm:$0xf] %vm1344, %v1337
        %1347 = vst.msk [vmem:[%s265 + $0x8] sm:$0xf] %vm1344, %v1338
        %1348 = vst.msk [vmem:[%s265 + $0xc] sm:$0xf] %vm1344, %v1339
        %1349 = vst.msk [vmem:[%s265 + $0x10] sm:$0xf] %vm1344, %v1340
        %1350 = vst.msk [vmem:[%s265 + $0x14] sm:$0xf] %vm1344, %v1341
        %1351 = vst.msk [vmem:[%s265 + $0x18] sm:$0xf] %vm1344, %v1342
        %1352 = vst.msk [vmem:[%s265 + $0x1c] sm:$0xf] %vm1344, %v1343
        %s1353 = sand.u32 %s135, 1
        %s1354 = scalar_lea.sflag [#allocation4], %s1353
        %s1355 = sand.u32 %s135, 1
        %s1356 = smul.addr %s1355, 32
        %s1357 = scalar_lea.vmem [#allocation8], %s1356
        // Predicated region
        $region49: #{tpu_custom_call.1} parent=35 // pred_check
          %p1358 = pneg %p145
        $region50: #{tpu_custom_call.1} parent=35 // pred_check_branch
          %1360 = sbr.rel (%p1358) target = $region52
        $region51: #{tpu_custom_call.1} parent=35 // pred_region
          %s1361 = smul.u32 2, %s27
          %1363 = vsyncadd %s1354, 0
          %s1364 = smul.addr %s26, 8
          %s1365 = sadd.s32 %s1361, %s1364
          %s1366 = smul.addr %s1365, 4
          %s1367 = scalar_lea.hbm %s4, %s1366
          %s1368 = sshll.u32 %s1357, 4
          %s1369 = int_to_ptr.vmem [resolvable:$true] %s1368
          %s1370 = sshll.u32 %s1367, 4
          %s1371 = int_to_ptr.hbm [resolvable:$true] %s1370
          %1376 = dma.vmem_to_hbm [thread:$0]  %s1369, 512, %s1371, %s1354, 64, 64, 4
        $region52: #{tpu_custom_call.1} parent=35 // pred_fallthru
          _
      $region36: #{tpu_custom_call.1} parent=5 // pred_fallthru
        _
      %p1377 = scmp.le.s32.totalorder 2, %s17
      // Predicated region
      $region53: #{tpu_custom_call.1} parent=5 // pred_check
        %p1378 = pneg %p1377
      $region54: #{tpu_custom_call.1} parent=5 // pred_check_branch
        %1380 = sbr.rel (%p1378) target = $region56
      $region55: #{tpu_custom_call.1} parent=5 // pred_region
        %s1381 = ssub.s32 %s17, 2
        // Predicated region
        $region57: #{tpu_custom_call.1} parent=55 // pred_check
          %p1382 = pneg %p151
        $region58: #{tpu_custom_call.1} parent=55 // pred_check_branch
          %1384 = sbr.rel (%p1382) target = $region60
        $region59: #{tpu_custom_call.1} parent=55 // pred_region
          %s1385 = sand.u32 %s136, 1
          %s1386 = scalar_lea.sflag [#allocation4], %s1385
          %s1387 = sand.u32 %s136, 1
          %s1388 = smul.addr %s1387, 32
          %s1389 = scalar_lea.vmem [#allocation8], %s1388
          %1391 = dma.done %s1386, 512
        $region60: #{tpu_custom_call.1} parent=55 // pred_fallthru
          _
      $region56: #{tpu_custom_call.1} parent=5 // pred_fallthru
        _
    $region6: #{tpu_custom_call.1} parent=1 // loop_footer
      %s21 = sadd.s32 1, %s17
    $region7: #{tpu_custom_call.1} parent=1 // loop_footer_branch
      %16 = sbr.rel target = $region3
    $region8: #{tpu_custom_call.1} parent=1 // loop_exit
      _
    %1392 = vsyncpa [#allocation3], 1
    %s1393 = scalar_lea.sflag [#allocation3], 1
    %1394 = vsyncpa %s1393, 1
    %1395 = vsyncpa [#allocation6], 1
    %1396 = vsyncpa [#allocation4], 1
    %s1397 = scalar_lea.sflag [#allocation4], 1
    %1398 = vsyncpa %s1397, 1

</llo_original>
